<compile_context>
chip_gen: v6e
topology: v6e:2x2x1
jax: 0.10.0
libtpu: 0.0.40
codegen_flags: <defaults>
</compile_context>

<pallas_src>
import functools

import jax
import jax.numpy as jnp
from jax.experimental import pallas as pl
from jax.experimental.pallas import tpu as pltpu

IMAGE_DIM = 28 * 28 * 1   # 784
HIDDEN = 128


def _round_up(n, m):
    return ((n + m - 1) // m) * m


def discriminator_kernel(x_ref, w1_ref, b1_ref, w2_ref, b2_ref, o_ref):
    """One batch tile: (x @ W1 + b1) -> LeakyReLU(0.1) -> (. W2 + b2) -> sigmoid."""
    # Layer 1: Linear(784 -> 128) on the MXU, bf16 operands, f32 accumulation.
    x = x_ref[...].astype(jnp.bfloat16)                       # (TB, 784)
    w1 = w1_ref[...].astype(jnp.bfloat16)                     # (784, 128)
    h = jnp.dot(x, w1, preferred_element_type=jnp.float32)    # (TB, 128) f32
    h = h + b1_ref[...].astype(jnp.float32)                   # + (1, 128)
    # LeakyReLU(negative_slope=0.1) on the VPU in f32.
    h = jnp.where(h >= 0, h, 0.1 * h)
    # Layer 2: Linear(128 -> 1) as VPU multiply + cross-lane reduce
    # (an N=1 MXU matmul would waste 127/128 output columns).
    w2_row = w2_ref[...].astype(jnp.float32)                  # (1, 128)
    logits = jnp.sum(h * w2_row, axis=-1, keepdims=True)      # (TB, 1) f32
    logits = logits + b2_ref[...].astype(jnp.float32)         # + (1, 1)
    # Sigmoid: EUP exp + approximate EUP reciprocal.
    o_ref[...] = pl.reciprocal(1.0 + jnp.exp(-logits), approx=True)


@functools.partial(jax.jit, static_argnames=("block_b",))
def discriminator_forward(x, w1, b1, w2, b2, *, block_b=512):
    """x: (B, IMAGE_DIM) -> (B, 1) float32 probabilities."""
    B = x.shape[0]
    assert x.shape[1] == IMAGE_DIM, x.shape
    # Batch tile: big enough to pipeline well, small enough for v7x's 64 MiB VMEM.
    tb = min(block_b, _round_up(B, 128))
    b_pad = _round_up(B, tb)
    if b_pad != B:
        x = jnp.pad(x, ((0, b_pad - B), (0, 0)))
    grid = (b_pad // tb,)

    bytes_accessed = (
        b_pad * IMAGE_DIM * x.dtype.itemsize        # streamed activations
        + IMAGE_DIM * HIDDEN * w1.dtype.itemsize    # resident weights
        + HIDDEN * b1.dtype.itemsize
        + HIDDEN * w2.dtype.itemsize
        + b2.dtype.itemsize
        + b_pad * 4                                  # f32 output
    )
    cost = pl.CostEstimate(
        flops=2 * b_pad * IMAGE_DIM * HIDDEN + 2 * b_pad * HIDDEN,
        transcendentals=b_pad,
        bytes_accessed=bytes_accessed,
    )

    out = pl.pallas_call(
        discriminator_kernel,
        out_shape=jax.ShapeDtypeStruct((b_pad, 1), jnp.float32),
        grid_spec=pltpu.PrefetchScalarGridSpec(
            num_scalar_prefetch=0,
            grid=grid,
            in_specs=[
                pl.BlockSpec((tb, IMAGE_DIM), lambda i: (i, 0)),      # x tile (streamed)
                pl.BlockSpec((IMAGE_DIM, HIDDEN), lambda i: (0, 0)),  # W1 (VMEM-resident)
                pl.BlockSpec((1, HIDDEN), lambda i: (0, 0)),          # b1 (resident)
                pl.BlockSpec((1, HIDDEN), lambda i: (0, 0)),          # W2 row (resident)
                pl.BlockSpec((1, 1), lambda i: (0, 0)),               # b2 (resident)
            ],
            out_specs=pl.BlockSpec((tb, 1), lambda i: (i, 0)),
        ),
        compiler_params=pltpu.CompilerParams(
            dimension_semantics=("parallel",),          # megacore batch sharding (v7x)
            vmem_limit_bytes=32 * 1024 * 1024,
        ),
        cost_estimate=cost,
    )(x, w1, b1, w2, b2)
    return out[:B]


def init_params(key):
    """Deterministic init mimicking torch.nn.Linear's U(-1/sqrt(fan_in), +)."""
    k1, k2, k3, k4 = jax.random.split(key, 4)
    bound1 = 1.0 / (IMAGE_DIM ** 0.5)
    bound2 = 1.0 / (HIDDEN ** 0.5)
    # W1 stored transposed vs torch as (in, out) so the kernel computes x @ W1.
    # W2 stored as the torch-layout (1, 128) row used by the lane reduction.
    w1 = jax.random.uniform(
        k1, (IMAGE_DIM, HIDDEN), jnp.float32, -bound1, bound1).astype(jnp.bfloat16)
    b1 = jax.random.uniform(k2, (1, HIDDEN), jnp.float32, -bound1, bound1)
    w2 = jax.random.uniform(
        k3, (1, HIDDEN), jnp.float32, -bound2, bound2).astype(jnp.bfloat16)
    b2 = jax.random.uniform(k4, (1, 1), jnp.float32, -bound2, bound2)
    return w1, b1, w2, b2


def reference_forward(x, w1, b1, w2, b2):
    """Pure-JAX f32 reference for correctness check."""
    h = x.astype(jnp.float32) @ w1.astype(jnp.float32) + b1
    h = jnp.where(h >= 0, h, 0.1 * h)
    logits = h @ w2.astype(jnp.float32).T + b2
    return jax.nn.sigmoid(logits)


if __name__ == "__main__":
    key = jax.random.PRNGKey(0)
    k_params, k_x = jax.random.split(key)

    # Small batch of flattened 28x28x1 "images" (kernel pads to one 128-row tile).
    B = 8
    x = jax.random.normal(k_x, (B, IMAGE_DIM), jnp.float32).astype(jnp.bfloat16)
    w1, b1, w2, b2 = init_params(k_params)

    out = jax.block_until_ready(discriminator_forward(x, w1, b1, w2, b2))
    ref = reference_forward(x, w1, b1, w2, b2)

    assert out.shape == (B, 1), out.shape
    assert bool(jnp.all(jnp.isfinite(out)))
    max_err = float(jnp.max(jnp.abs(out - ref)))
    assert max_err < 2e-2, f"mismatch vs reference: {max_err}"

    print("KERNEL_OK")
</pallas_src>

<mosaic_0001>
module attributes {stable_mosaic.version = 11 : i64} {
  func.func @discriminator_kernel(%arg0: i32, %arg1: memref<128x784xbf16, #tpu.memory_space<vmem>>, %arg2: memref<784x128xbf16, #tpu.memory_space<vmem>>, %arg3: memref<1x128xf32, #tpu.memory_space<vmem>>, %arg4: memref<1x128xbf16, #tpu.memory_space<vmem>>, %arg5: memref<1x1xf32, #tpu.memory_space<vmem>>, %arg6: memref<128x1xf32, #tpu.memory_space<vmem>>) attributes {dimension_semantics = [#tpu.dimension_semantics<parallel>], iteration_bounds = array<i64: 1>, scalar_prefetch = 0 : i64, scratch_operands = 0 : i64, tpu.core_type = #tpu.core_type<tc>, window_params = [{transform_indices = @transform_0, window_bounds = array<i64: 128, 784>}, {pipeline_mode = #tpu.pipeline_mode<synchronous>, transform_indices = @transform_1, window_bounds = array<i64: 784, 128>}, {pipeline_mode = #tpu.pipeline_mode<synchronous>, transform_indices = @transform_2, window_bounds = array<i64: 1, 128>}, {pipeline_mode = #tpu.pipeline_mode<synchronous>, transform_indices = @transform_3, window_bounds = array<i64: 1, 128>}, {pipeline_mode = #tpu.pipeline_mode<synchronous>, transform_indices = @transform_4, window_bounds = array<i64: 1, 1>}, {transform_indices = @transform_5, window_bounds = array<i64: 128, 1>}]} {
    %c0 = arith.constant 0 : index
    %c0_0 = arith.constant 0 : index
    %0 = vector.load %arg1[%c0, %c0_0] : memref<128x784xbf16, #tpu.memory_space<vmem>>, vector<128x784xbf16>
    %c0_1 = arith.constant 0 : index
    %c0_2 = arith.constant 0 : index
    %1 = vector.load %arg2[%c0_1, %c0_2] : memref<784x128xbf16, #tpu.memory_space<vmem>>, vector<784x128xbf16>
    %cst = arith.constant dense<0.000000e+00> : vector<128x128xf32>
    %2 = tpu.matmul %0, %1, %cst {dimension_numbers = #tpu.dot_dimension_numbers<[1], [0], [0], [1], [0, 0, 1, 1], [], []>} : vector<128x784xbf16>, vector<784x128xbf16>, vector<128x128xf32> -> vector<128x128xf32>
    %c0_3 = arith.constant 0 : index
    %c0_4 = arith.constant 0 : index
    %3 = vector.load %arg3[%c0_3, %c0_4] : memref<1x128xf32, #tpu.memory_space<vmem>>, vector<1x128xf32>
    %4 = vector.broadcast %3 : vector<1x128xf32> to vector<128x128xf32>
    %5 = arith.addf %2, %4 : vector<128x128xf32>
    %cst_5 = arith.constant 0.000000e+00 : f32
    %6 = vector.broadcast %cst_5 : f32 to vector<128x128xf32>
    %7 = arith.cmpf oge, %5, %6 : vector<128x128xf32>
    %cst_6 = arith.constant 1.000000e-01 : f32
    %8 = vector.broadcast %cst_6 : f32 to vector<128x128xf32>
    %9 = arith.mulf %8, %5 : vector<128x128xf32>
    %10 = arith.select %7, %5, %9 : vector<128x128xi1>, vector<128x128xf32>
    %c0_7 = arith.constant 0 : index
    %c0_8 = arith.constant 0 : index
    %11 = vector.load %arg4[%c0_7, %c0_8] : memref<1x128xbf16, #tpu.memory_space<vmem>>, vector<1x128xbf16>
    %12 = arith.extf %11 : vector<1x128xbf16> to vector<1x128xf32>
    %13 = vector.broadcast %12 : vector<1x128xf32> to vector<128x128xf32>
    %14 = arith.mulf %10, %13 : vector<128x128xf32>
    %cst_9 = arith.constant dense<0.000000e+00> : vector<128xf32>
    %15 = vector.multi_reduction <add>, %14, %cst_9 [1] : vector<128x128xf32> to vector<128xf32>
    %16 = vector.shape_cast %15 : vector<128xf32> to vector<128x1xf32>
    %c0_10 = arith.constant 0 : index
    %c0_11 = arith.constant 0 : index
    %17 = vector.load %arg5[%c0_10, %c0_11] : memref<1x1xf32, #tpu.memory_space<vmem>>, vector<1x1xf32>
    %18 = vector.broadcast %17 : vector<1x1xf32> to vector<128x1xf32>
    %19 = arith.addf %16, %18 : vector<128x1xf32>
    %cst_12 = arith.constant 0.000000e+00 : f32
    %20 = vector.broadcast %cst_12 : f32 to vector<128x1xf32>
    %21 = arith.subf %20, %19 : vector<128x1xf32>
    %22 = math.exp %21 : vector<128x1xf32>
    %cst_13 = arith.constant 1.000000e+00 : f32
    %23 = vector.broadcast %cst_13 : f32 to vector<128x1xf32>
    %24 = arith.addf %23, %22 : vector<128x1xf32>
    %25 = tpu.reciprocal %24 {approx = true} : vector<128x1xf32> -> vector<128x1xf32>
    %c0_14 = arith.constant 0 : index
    %c0_15 = arith.constant 0 : index
    %26 = vector.load %arg6[%c0_14, %c0_15] : memref<128x1xf32, #tpu.memory_space<vmem>>, vector<128x1xf32>
    tpu.vector_store %arg6[%c0_14, %c0_15], %25 {strides = array<i32>} : memref<128x1xf32, #tpu.memory_space<vmem>>, vector<128x1xf32>,
    return
  }
  func.func @transform_0(%arg0: i32) -> (i32, i32) {
    %c0_i32 = arith.constant 0 : i32
    %c0_i32_0 = arith.constant 0 : i32
    return %arg0, %c0_i32 : i32, i32
  }
  func.func @transform_1(%arg0: i32) -> (i32, i32) {
    %c0_i32 = arith.constant 0 : i32
    %c0_i32_0 = arith.constant 0 : i32
    %c0_i32_1 = arith.constant 0 : i32
    return %c0_i32, %c0_i32_0 : i32, i32
  }
  func.func @transform_2(%arg0: i32) -> (i32, i32) {
    %c0_i32 = arith.constant 0 : i32
    %c0_i32_0 = arith.constant 0 : i32
    %c0_i32_1 = arith.constant 0 : i32
    return %c0_i32, %c0_i32_0 : i32, i32
  }
  func.func @transform_3(%arg0: i32) -> (i32, i32) {
    %c0_i32 = arith.constant 0 : i32
    %c0_i32_0 = arith.constant 0 : i32
    %c0_i32_1 = arith.constant 0 : i32
    return %c0_i32, %c0_i32_0 : i32, i32
  }
  func.func @transform_4(%arg0: i32) -> (i32, i32) {
    %c0_i32 = arith.constant 0 : i32
    %c0_i32_0 = arith.constant 0 : i32
    %c0_i32_1 = arith.constant 0 : i32
    return %c0_i32, %c0_i32_0 : i32, i32
  }
  func.func @transform_5(%arg0: i32) -> (i32, i32) {
    %c0_i32 = arith.constant 0 : i32
    %c0_i32_0 = arith.constant 0 : i32
    return %arg0, %c0_i32 : i32, i32
  }
}

</mosaic_0001>

<llo_original>
// kernel: discriminator_forward.1
$region0: #{discriminator_forward.1}
  #allocation0 [shape = 'u32[]', space=smem, size = 0x4, offset = 0x4, fixed_abs, tag = 'smem constant byte address 0x4 - core index']
  #allocation1 [shape = 'u32[144,128]{1,0:T(1,128)}', space=vmem, size = 0x12000, scoped, tag = 'internal scratch']
  #allocation2 [shape = 'f32[1,1]{1,0:T(1,128)S(1)}', space=vmem, size = 0x200, scoped, tag = 'scoped memory for discriminator_forward.1']
  %s0 = inlined_call_operand.vmem [shape: bf16[128,784], index: 0, kind: input, shape index: {}]
  %s1 = inlined_call_operand.vmem [shape: bf16[784,128], index: 1, kind: input, shape index: {}]
  %s2 = inlined_call_operand.vmem [shape: f32[1,128], index: 2, kind: input, shape index: {}]
  %s3 = inlined_call_operand.vmem [shape: bf16[1,128], index: 3, kind: input, shape index: {}]
  %s4 = inlined_call_operand.<no memory space> [shape: f32[1,1], index: 4, kind: input, shape index: {}]
  %s5 = inlined_call_operand.vmem [shape: f32[128,1], index: 5, kind: output, shape index: {}]
  %s6 = sld [smem:[#allocation0]]
  $region30: #{discriminator_forward.1} parent=0
    _
  %s8 = ssub.s32 1, %s6
  %s9 = scalar_select 0, %s8, %s6
  %v10 = vstv %s4
  %11 = vst [vmem:[#allocation2] sm:$0x1] %v10
  // Predicated region
  $region2: #{discriminator_forward.1} parent=0 // pred_check
    _
  $region3: #{discriminator_forward.1} parent=0 // pred_check_branch
    %13 = sbr.rel (0) target = $region5
  $region4: #{discriminator_forward.1} parent=0 // pred_region
    _
  $region5: #{discriminator_forward.1} parent=0 // pred_fallthru
    _
  // Predicated region
  $region6: #{discriminator_forward.1} parent=0 // pred_check
    _
  $region7: #{discriminator_forward.1} parent=0 // pred_check_branch
    %15 = sbr.rel (0) target = $region9
  $region8: #{discriminator_forward.1} parent=0 // pred_region
    _
  $region9: #{discriminator_forward.1} parent=0 // pred_fallthru
    _
  // Predicated region
  $region10: #{discriminator_forward.1} parent=0 // pred_check
    _
  $region11: #{discriminator_forward.1} parent=0 // pred_check_branch
    %17 = sbr.rel (0) target = $region13
  $region12: #{discriminator_forward.1} parent=0 // pred_region
    _
  $region13: #{discriminator_forward.1} parent=0 // pred_fallthru
    _
  // Predicated region
  $region14: #{discriminator_forward.1} parent=0 // pred_check
    _
  $region15: #{discriminator_forward.1} parent=0 // pred_check_branch
    %19 = sbr.rel (0) target = $region17
  $region16: #{discriminator_forward.1} parent=0 // pred_region
    _
  $region17: #{discriminator_forward.1} parent=0 // pred_fallthru
    _
  // Predicated region
  $region18: #{discriminator_forward.1} parent=0 // pred_check
    _
  $region19: #{discriminator_forward.1} parent=0 // pred_check_branch
    %21 = sbr.rel (0) target = $region21
  $region20: #{discriminator_forward.1} parent=0 // pred_region
    _
  $region21: #{discriminator_forward.1} parent=0 // pred_fallthru
    _
  %v23 = vld [vmem:[%s0] sm:$0xff]
  %v24 = vld [vmem:[%s0 + $0x8] sm:$0xff]
  %v25 = vld [vmem:[%s0 + $0x10] sm:$0xff]
  %v26 = vld [vmem:[%s0 + $0x18] sm:$0xf]
  %v27 = vld [vmem:[%s0 + $0x1c] sm:$0xff]
  %v28 = vld [vmem:[%s0 + $0x24] sm:$0xff]
  %v29 = vld [vmem:[%s0 + $0x2c] sm:$0xff]
  %v30 = vld [vmem:[%s0 + $0x34] sm:$0xf]
  %v31 = vld [vmem:[%s0 + $0x38] sm:$0xff]
  %v32 = vld [vmem:[%s0 + $0x40] sm:$0xff]
  %v33 = vld [vmem:[%s0 + $0x48] sm:$0xff]
  %v34 = vld [vmem:[%s0 + $0x50] sm:$0xf]
  %v35 = vld [vmem:[%s0 + $0x54] sm:$0xff]
  %v36 = vld [vmem:[%s0 + $0x5c] sm:$0xff]
  %v37 = vld [vmem:[%s0 + $0x64] sm:$0xff]
  %v38 = vld [vmem:[%s0 + $0x6c] sm:$0xf]
  %v39 = vld [vmem:[%s0 + $0x70] sm:$0xff]
  %v40 = vld [vmem:[%s0 + $0x78] sm:$0xff]
  %v41 = vld [vmem:[%s0 + $0x80] sm:$0xff]
  %v42 = vld [vmem:[%s0 + $0x88] sm:$0xf]
  %v43 = vld [vmem:[%s0 + $0x8c] sm:$0xff]
  %v44 = vld [vmem:[%s0 + $0x94] sm:$0xff]
  %v45 = vld [vmem:[%s0 + $0x9c] sm:$0xff]
  %v46 = vld [vmem:[%s0 + $0xa4] sm:$0xf]
  %v47 = vld [vmem:[%s0 + $0xa8] sm:$0xff]
  %v48 = vld [vmem:[%s0 + $0xb0] sm:$0xff]
  %v49 = vld [vmem:[%s0 + $0xb8] sm:$0xff]
  %v50 = vld [vmem:[%s0 + $0xc0] sm:$0xf]
  %v51 = vld [vmem:[%s0 + $0xc4] sm:$0xff]
  %v52 = vld [vmem:[%s0 + $0xcc] sm:$0xff]
  %v53 = vld [vmem:[%s0 + $0xd4] sm:$0xff]
  %v54 = vld [vmem:[%s0 + $0xdc] sm:$0xf]
  %v55 = vld [vmem:[%s0 + $0xe0] sm:$0xff]
  %v56 = vld [vmem:[%s0 + $0xe8] sm:$0xff]
  %v57 = vld [vmem:[%s0 + $0xf0] sm:$0xff]
  %v58 = vld [vmem:[%s0 + $0xf8] sm:$0xf]
  %v59 = vld [vmem:[%s0 + $0xfc] sm:$0xff]
  %v60 = vld [vmem:[%s0 + $0x104] sm:$0xff]
  %v61 = vld [vmem:[%s0 + $0x10c] sm:$0xff]
  %v62 = vld [vmem:[%s0 + $0x114] sm:$0xf]
  %v63 = vld [vmem:[%s0 + $0x118] sm:$0xff]
  %v64 = vld [vmem:[%s0 + $0x120] sm:$0xff]
  %v65 = vld [vmem:[%s0 + $0x128] sm:$0xff]
  %v66 = vld [vmem:[%s0 + $0x130] sm:$0xf]
  %v67 = vld [vmem:[%s0 + $0x134] sm:$0xff]
  %v68 = vld [vmem:[%s0 + $0x13c] sm:$0xff]
  %v69 = vld [vmem:[%s0 + $0x144] sm:$0xff]
  %v70 = vld [vmem:[%s0 + $0x14c] sm:$0xf]
  %v71 = vld [vmem:[%s0 + $0x150] sm:$0xff]
  %v72 = vld [vmem:[%s0 + $0x158] sm:$0xff]
  %v73 = vld [vmem:[%s0 + $0x160] sm:$0xff]
  %v74 = vld [vmem:[%s0 + $0x168] sm:$0xf]
  %v75 = vld [vmem:[%s0 + $0x16c] sm:$0xff]
  %v76 = vld [vmem:[%s0 + $0x174] sm:$0xff]
  %v77 = vld [vmem:[%s0 + $0x17c] sm:$0xff]
  %v78 = vld [vmem:[%s0 + $0x184] sm:$0xf]
  %v79 = vld [vmem:[%s0 + $0x188] sm:$0xff]
  %v80 = vld [vmem:[%s0 + $0x190] sm:$0xff]
  %v81 = vld [vmem:[%s0 + $0x198] sm:$0xff]
  %v82 = vld [vmem:[%s0 + $0x1a0] sm:$0xf]
  %v83 = vld [vmem:[%s0 + $0x1a4] sm:$0xff]
  %v84 = vld [vmem:[%s0 + $0x1ac] sm:$0xff]
  %v85 = vld [vmem:[%s0 + $0x1b4] sm:$0xff]
  %v86 = vld [vmem:[%s0 + $0x1bc] sm:$0xf]
  %v87 = vld [vmem:[%s1] sm:$0xf]
  %v88 = vld [vmem:[%s1 + $0x4] sm:$0xf]
  %v89 = vld [vmem:[%s1 + $0x8] sm:$0xf]
  %v90 = vld [vmem:[%s1 + $0xc] sm:$0xf]
  %v91 = vld [vmem:[%s1 + $0x10] sm:$0xf]
  %v92 = vld [vmem:[%s1 + $0x14] sm:$0xf]
  %v93 = vld [vmem:[%s1 + $0x18] sm:$0xf]
  %v94 = vld [vmem:[%s1 + $0x1c] sm:$0xf]
  %v95 = vld [vmem:[%s1 + $0x20] sm:$0xf]
  %v96 = vld [vmem:[%s1 + $0x24] sm:$0xf]
  %v97 = vld [vmem:[%s1 + $0x28] sm:$0xf]
  %v98 = vld [vmem:[%s1 + $0x2c] sm:$0xf]
  %v99 = vld [vmem:[%s1 + $0x30] sm:$0xf]
  %v100 = vld [vmem:[%s1 + $0x34] sm:$0xf]
  %v101 = vld [vmem:[%s1 + $0x38] sm:$0xf]
  %v102 = vld [vmem:[%s1 + $0x3c] sm:$0xf]
  %v103 = vld [vmem:[%s1 + $0x40] sm:$0xf]
  %v104 = vld [vmem:[%s1 + $0x44] sm:$0xf]
  %v105 = vld [vmem:[%s1 + $0x48] sm:$0xf]
  %v106 = vld [vmem:[%s1 + $0x4c] sm:$0xf]
  %v107 = vld [vmem:[%s1 + $0x50] sm:$0xf]
  %v108 = vld [vmem:[%s1 + $0x54] sm:$0xf]
  %v109 = vld [vmem:[%s1 + $0x58] sm:$0xf]
  %v110 = vld [vmem:[%s1 + $0x5c] sm:$0xf]
  %v111 = vld [vmem:[%s1 + $0x60] sm:$0xf]
  %v112 = vld [vmem:[%s1 + $0x64] sm:$0xf]
  %v113 = vld [vmem:[%s1 + $0x68] sm:$0xf]
  %v114 = vld [vmem:[%s1 + $0x6c] sm:$0xf]
  %v115 = vld [vmem:[%s1 + $0x70] sm:$0xf]
  %v116 = vld [vmem:[%s1 + $0x74] sm:$0xf]
  %v117 = vld [vmem:[%s1 + $0x78] sm:$0xf]
  %v118 = vld [vmem:[%s1 + $0x7c] sm:$0xf]
  %v119 = vld [vmem:[%s1 + $0x80] sm:$0xf]
  %v120 = vld [vmem:[%s1 + $0x84] sm:$0xf]
  %v121 = vld [vmem:[%s1 + $0x88] sm:$0xf]
  %v122 = vld [vmem:[%s1 + $0x8c] sm:$0xf]
  %v123 = vld [vmem:[%s1 + $0x90] sm:$0xf]
  %v124 = vld [vmem:[%s1 + $0x94] sm:$0xf]
  %v125 = vld [vmem:[%s1 + $0x98] sm:$0xf]
  %v126 = vld [vmem:[%s1 + $0x9c] sm:$0xf]
  %v127 = vld [vmem:[%s1 + $0xa0] sm:$0xf]
  %v128 = vld [vmem:[%s1 + $0xa4] sm:$0xf]
  %v129 = vld [vmem:[%s1 + $0xa8] sm:$0xf]
  %v130 = vld [vmem:[%s1 + $0xac] sm:$0xf]
  %v131 = vld [vmem:[%s1 + $0xb0] sm:$0xf]
  %v132 = vld [vmem:[%s1 + $0xb4] sm:$0xf]
  %v133 = vld [vmem:[%s1 + $0xb8] sm:$0xf]
  %v134 = vld [vmem:[%s1 + $0xbc] sm:$0xf]
  %v135 = vld [vmem:[%s1 + $0xc0] sm:$0xf]
  %v136 = vld [vmem:[%s1 + $0xc4] sm:$0xf]
  %v137 = vld [vmem:[%s1 + $0xc8] sm:$0xf]
  %v138 = vld [vmem:[%s1 + $0xcc] sm:$0xf]
  %v139 = vld [vmem:[%s1 + $0xd0] sm:$0xf]
  %v140 = vld [vmem:[%s1 + $0xd4] sm:$0xf]
  %v141 = vld [vmem:[%s1 + $0xd8] sm:$0xf]
  %v142 = vld [vmem:[%s1 + $0xdc] sm:$0xf]
  %v143 = vld [vmem:[%s1 + $0xe0] sm:$0xf]
  %v144 = vld [vmem:[%s1 + $0xe4] sm:$0xf]
  %v145 = vld [vmem:[%s1 + $0xe8] sm:$0xf]
  %v146 = vld [vmem:[%s1 + $0xec] sm:$0xf]
  %v147 = vld [vmem:[%s1 + $0xf0] sm:$0xf]
  %v148 = vld [vmem:[%s1 + $0xf4] sm:$0xf]
  %v149 = vld [vmem:[%s1 + $0xf8] sm:$0xf]
  %v150 = vld [vmem:[%s1 + $0xfc] sm:$0xf]
  %v151 = vld [vmem:[%s1 + $0x100] sm:$0xf]
  %v152 = vld [vmem:[%s1 + $0x104] sm:$0xf]
  %v153 = vld [vmem:[%s1 + $0x108] sm:$0xf]
  %v154 = vld [vmem:[%s1 + $0x10c] sm:$0xf]
  %v155 = vld [vmem:[%s1 + $0x110] sm:$0xf]
  %v156 = vld [vmem:[%s1 + $0x114] sm:$0xf]
  %v157 = vld [vmem:[%s1 + $0x118] sm:$0xf]
  %v158 = vld [vmem:[%s1 + $0x11c] sm:$0xf]
  %v159 = vld [vmem:[%s1 + $0x120] sm:$0xf]
  %v160 = vld [vmem:[%s1 + $0x124] sm:$0xf]
  %v161 = vld [vmem:[%s1 + $0x128] sm:$0xf]
  %v162 = vld [vmem:[%s1 + $0x12c] sm:$0xf]
  %v163 = vld [vmem:[%s1 + $0x130] sm:$0xf]
  %v164 = vld [vmem:[%s1 + $0x134] sm:$0xf]
  %v165 = vld [vmem:[%s1 + $0x138] sm:$0xf]
  %v166 = vld [vmem:[%s1 + $0x13c] sm:$0xf]
  %v167 = vld [vmem:[%s1 + $0x140] sm:$0xf]
  %v168 = vld [vmem:[%s1 + $0x144] sm:$0xf]
  %v169 = vld [vmem:[%s1 + $0x148] sm:$0xf]
  %v170 = vld [vmem:[%s1 + $0x14c] sm:$0xf]
  %v171 = vld [vmem:[%s1 + $0x150] sm:$0xf]
  %v172 = vld [vmem:[%s1 + $0x154] sm:$0xf]
  %v173 = vld [vmem:[%s1 + $0x158] sm:$0xf]
  %v174 = vld [vmem:[%s1 + $0x15c] sm:$0xf]
  %v175 = vld [vmem:[%s1 + $0x160] sm:$0xf]
  %v176 = vld [vmem:[%s1 + $0x164] sm:$0xf]
  %v177 = vld [vmem:[%s1 + $0x168] sm:$0xf]
  %v178 = vld [vmem:[%s1 + $0x16c] sm:$0xf]
  %v179 = vld [vmem:[%s1 + $0x170] sm:$0xf]
  %v180 = vld [vmem:[%s1 + $0x174] sm:$0xf]
  %v181 = vld [vmem:[%s1 + $0x178] sm:$0xf]
  %v182 = vld [vmem:[%s1 + $0x17c] sm:$0xf]
  %v183 = vld [vmem:[%s1 + $0x180] sm:$0xf]
  %v184 = vld [vmem:[%s1 + $0x184] sm:$0xf]
  %v185 = vld [vmem:[%s2] sm:$0x1]
  %v187 = vlaneseq
  %v188 = vshrl.u32 %v187, 7
  %v189 = vsub.s32 0, %v188
  %v190 = vrot.slane %v185, %v189
  %v256 = vunpack.c.l.b16 %v23
  %v257 = vunpack.c.h.b16 %v23
  %v258 = vunpack.c.l.b16 %v24
  %v259 = vunpack.c.h.b16 %v24
  %v260 = vunpack.c.l.b16 %v25
  %v261 = vunpack.c.h.b16 %v25
  %v262 = vunpack.c.l.b16 %v26
  %v263 = vunpack.c.l.b16 %v27
  %v264 = vunpack.c.h.b16 %v27
  %v265 = vunpack.c.l.b16 %v28
  %v266 = vunpack.c.h.b16 %v28
  %v267 = vunpack.c.l.b16 %v29
  %v268 = vunpack.c.h.b16 %v29
  %v269 = vunpack.c.l.b16 %v30
  %v270 = vunpack.c.l.b16 %v31
  %v271 = vunpack.c.h.b16 %v31
  %v272 = vunpack.c.l.b16 %v32
  %v273 = vunpack.c.h.b16 %v32
  %v274 = vunpack.c.l.b16 %v33
  %v275 = vunpack.c.h.b16 %v33
  %v276 = vunpack.c.l.b16 %v34
  %v277 = vunpack.c.l.b16 %v35
  %v278 = vunpack.c.h.b16 %v35
  %v279 = vunpack.c.l.b16 %v36
  %v280 = vunpack.c.h.b16 %v36
  %v281 = vunpack.c.l.b16 %v37
  %v282 = vunpack.c.h.b16 %v37
  %v283 = vunpack.c.l.b16 %v38
  %v284 = vunpack.c.l.b16 %v39
  %v285 = vunpack.c.h.b16 %v39
  %v286 = vunpack.c.l.b16 %v40
  %v287 = vunpack.c.h.b16 %v40
  %v288 = vunpack.c.l.b16 %v41
  %v289 = vunpack.c.h.b16 %v41
  %v290 = vunpack.c.l.b16 %v42
  %v291 = vunpack.c.l.b16 %v43
  %v292 = vunpack.c.h.b16 %v43
  %v293 = vunpack.c.l.b16 %v44
  %v294 = vunpack.c.h.b16 %v44
  %v295 = vunpack.c.l.b16 %v45
  %v296 = vunpack.c.h.b16 %v45
  %v297 = vunpack.c.l.b16 %v46
  %v298 = vunpack.c.l.b16 %v47
  %v299 = vunpack.c.h.b16 %v47
  %v300 = vunpack.c.l.b16 %v48
  %v301 = vunpack.c.h.b16 %v48
  %v302 = vunpack.c.l.b16 %v49
  %v303 = vunpack.c.h.b16 %v49
  %v304 = vunpack.c.l.b16 %v50
  %v305 = vunpack.c.l.b16 %v51
  %v306 = vunpack.c.h.b16 %v51
  %v307 = vunpack.c.l.b16 %v52
  %v308 = vunpack.c.h.b16 %v52
  %v309 = vunpack.c.l.b16 %v53
  %v310 = vunpack.c.h.b16 %v53
  %v311 = vunpack.c.l.b16 %v54
  %v312 = vunpack.c.l.b16 %v55
  %v313 = vunpack.c.h.b16 %v55
  %v314 = vunpack.c.l.b16 %v56
  %v315 = vunpack.c.h.b16 %v56
  %v316 = vunpack.c.l.b16 %v57
  %v317 = vunpack.c.h.b16 %v57
  %v318 = vunpack.c.l.b16 %v58
  %v319 = vunpack.c.l.b16 %v59
  %v320 = vunpack.c.h.b16 %v59
  %v321 = vunpack.c.l.b16 %v60
  %v322 = vunpack.c.h.b16 %v60
  %v323 = vunpack.c.l.b16 %v61
  %v324 = vunpack.c.h.b16 %v61
  %v325 = vunpack.c.l.b16 %v62
  %v326 = vunpack.c.l.b16 %v63
  %v327 = vunpack.c.h.b16 %v63
  %v328 = vunpack.c.l.b16 %v64
  %v329 = vunpack.c.h.b16 %v64
  %v330 = vunpack.c.l.b16 %v65
  %v331 = vunpack.c.h.b16 %v65
  %v332 = vunpack.c.l.b16 %v66
  %v333 = vunpack.c.l.b16 %v67
  %v334 = vunpack.c.h.b16 %v67
  %v335 = vunpack.c.l.b16 %v68
  %v336 = vunpack.c.h.b16 %v68
  %v337 = vunpack.c.l.b16 %v69
  %v338 = vunpack.c.h.b16 %v69
  %v339 = vunpack.c.l.b16 %v70
  %v340 = vunpack.c.l.b16 %v71
  %v341 = vunpack.c.h.b16 %v71
  %v342 = vunpack.c.l.b16 %v72
  %v343 = vunpack.c.h.b16 %v72
  %v344 = vunpack.c.l.b16 %v73
  %v345 = vunpack.c.h.b16 %v73
  %v346 = vunpack.c.l.b16 %v74
  %v347 = vunpack.c.l.b16 %v75
  %v348 = vunpack.c.h.b16 %v75
  %v349 = vunpack.c.l.b16 %v76
  %v350 = vunpack.c.h.b16 %v76
  %v351 = vunpack.c.l.b16 %v77
  %v352 = vunpack.c.h.b16 %v77
  %v353 = vunpack.c.l.b16 %v78
  %v354 = vunpack.c.l.b16 %v79
  %v355 = vunpack.c.h.b16 %v79
  %v356 = vunpack.c.l.b16 %v80
  %v357 = vunpack.c.h.b16 %v80
  %v358 = vunpack.c.l.b16 %v81
  %v359 = vunpack.c.h.b16 %v81
  %v360 = vunpack.c.l.b16 %v82
  %v361 = vunpack.c.l.b16 %v83
  %v362 = vunpack.c.h.b16 %v83
  %v363 = vunpack.c.l.b16 %v84
  %v364 = vunpack.c.h.b16 %v84
  %v365 = vunpack.c.l.b16 %v85
  %v366 = vunpack.c.h.b16 %v85
  %v367 = vunpack.c.l.b16 %v86
  %v368 = vpack.c.b16 %v263, %v256
  %v369 = vpack.c.b16 %v264, %v257
  %v370 = vpack.c.b16 %v265, %v258
  %v371 = vpack.c.b16 %v266, %v259
  %v372 = vpack.c.b16 %v267, %v260
  %v373 = vpack.c.b16 %v268, %v261
  %v374 = vpack.c.b16 %v269, %v262
  %v375 = vpack.c.b16 %v277, %v270
  %v376 = vpack.c.b16 %v278, %v271
  %v377 = vpack.c.b16 %v279, %v272
  %v378 = vpack.c.b16 %v280, %v273
  %v379 = vpack.c.b16 %v281, %v274
  %v380 = vpack.c.b16 %v282, %v275
  %v381 = vpack.c.b16 %v283, %v276
  %v382 = vpack.c.b16 %v291, %v284
  %v383 = vpack.c.b16 %v292, %v285
  %v384 = vpack.c.b16 %v293, %v286
  %v385 = vpack.c.b16 %v294, %v287
  %v386 = vpack.c.b16 %v295, %v288
  %v387 = vpack.c.b16 %v296, %v289
  %v388 = vpack.c.b16 %v297, %v290
  %v389 = vpack.c.b16 %v305, %v298
  %v390 = vpack.c.b16 %v306, %v299
  %v391 = vpack.c.b16 %v307, %v300
  %v392 = vpack.c.b16 %v308, %v301
  %v393 = vpack.c.b16 %v309, %v302
  %v394 = vpack.c.b16 %v310, %v303
  %v395 = vpack.c.b16 %v311, %v304
  %v396 = vpack.c.b16 %v319, %v312
  %v397 = vpack.c.b16 %v320, %v313
  %v398 = vpack.c.b16 %v321, %v314
  %v399 = vpack.c.b16 %v322, %v315
  %v400 = vpack.c.b16 %v323, %v316
  %v401 = vpack.c.b16 %v324, %v317
  %v402 = vpack.c.b16 %v325, %v318
  %v403 = vpack.c.b16 %v333, %v326
  %v404 = vpack.c.b16 %v334, %v327
  %v405 = vpack.c.b16 %v335, %v328
  %v406 = vpack.c.b16 %v336, %v329
  %v407 = vpack.c.b16 %v337, %v330
  %v408 = vpack.c.b16 %v338, %v331
  %v409 = vpack.c.b16 %v339, %v332
  %v410 = vpack.c.b16 %v347, %v340
  %v411 = vpack.c.b16 %v348, %v341
  %v412 = vpack.c.b16 %v349, %v342
  %v413 = vpack.c.b16 %v350, %v343
  %v414 = vpack.c.b16 %v351, %v344
  %v415 = vpack.c.b16 %v352, %v345
  %v416 = vpack.c.b16 %v353, %v346
  %v417 = vpack.c.b16 %v361, %v354
  %v418 = vpack.c.b16 %v362, %v355
  %v419 = vpack.c.b16 %v363, %v356
  %v420 = vpack.c.b16 %v364, %v357
  %v421 = vpack.c.b16 %v365, %v358
  %v422 = vpack.c.b16 %v366, %v359
  %v423 = vpack.c.b16 %v367, %v360
  %v570 = vunpack.c.l.b16 %v87
  %v571 = vunpack.c.l.b16 %v88
  %v572 = vunpack.c.l.b16 %v89
  %v573 = vunpack.c.l.b16 %v90
  %v574 = vunpack.c.l.b16 %v91
  %v575 = vunpack.c.l.b16 %v92
  %v576 = vunpack.c.l.b16 %v93
  %v577 = vunpack.c.l.b16 %v94
  %v578 = vunpack.c.l.b16 %v95
  %v579 = vunpack.c.l.b16 %v96
  %v580 = vunpack.c.l.b16 %v97
  %v581 = vunpack.c.l.b16 %v98
  %v582 = vunpack.c.l.b16 %v99
  %v583 = vunpack.c.l.b16 %v100
  %v584 = vunpack.c.l.b16 %v101
  %v585 = vunpack.c.l.b16 %v102
  %v586 = vunpack.c.l.b16 %v103
  %v587 = vunpack.c.l.b16 %v104
  %v588 = vunpack.c.l.b16 %v105
  %v589 = vunpack.c.l.b16 %v106
  %v590 = vunpack.c.l.b16 %v107
  %v591 = vunpack.c.l.b16 %v108
  %v592 = vunpack.c.l.b16 %v109
  %v593 = vunpack.c.l.b16 %v110
  %v594 = vunpack.c.l.b16 %v111
  %v595 = vunpack.c.l.b16 %v112
  %v596 = vunpack.c.l.b16 %v113
  %v597 = vunpack.c.l.b16 %v114
  %v598 = vunpack.c.l.b16 %v115
  %v599 = vunpack.c.l.b16 %v116
  %v600 = vunpack.c.l.b16 %v117
  %v601 = vunpack.c.l.b16 %v118
  %v602 = vunpack.c.l.b16 %v119
  %v603 = vunpack.c.l.b16 %v120
  %v604 = vunpack.c.l.b16 %v121
  %v605 = vunpack.c.l.b16 %v122
  %v606 = vunpack.c.l.b16 %v123
  %v607 = vunpack.c.l.b16 %v124
  %v608 = vunpack.c.l.b16 %v125
  %v609 = vunpack.c.l.b16 %v126
  %v610 = vunpack.c.l.b16 %v127
  %v611 = vunpack.c.l.b16 %v128
  %v612 = vunpack.c.l.b16 %v129
  %v613 = vunpack.c.l.b16 %v130
  %v614 = vunpack.c.l.b16 %v131
  %v615 = vunpack.c.l.b16 %v132
  %v616 = vunpack.c.l.b16 %v133
  %v617 = vunpack.c.l.b16 %v134
  %v618 = vunpack.c.l.b16 %v135
  %v619 = vunpack.c.l.b16 %v136
  %v620 = vunpack.c.l.b16 %v137
  %v621 = vunpack.c.l.b16 %v138
  %v622 = vunpack.c.l.b16 %v139
  %v623 = vunpack.c.l.b16 %v140
  %v624 = vunpack.c.l.b16 %v141
  %v625 = vunpack.c.l.b16 %v142
  %v626 = vunpack.c.l.b16 %v143
  %v627 = vunpack.c.l.b16 %v144
  %v628 = vunpack.c.l.b16 %v145
  %v629 = vunpack.c.l.b16 %v146
  %v630 = vunpack.c.l.b16 %v147
  %v631 = vunpack.c.l.b16 %v148
  %v632 = vunpack.c.l.b16 %v149
  %v633 = vunpack.c.l.b16 %v150
  %v634 = vunpack.c.l.b16 %v151
  %v635 = vunpack.c.l.b16 %v152
  %v636 = vunpack.c.l.b16 %v153
  %v637 = vunpack.c.l.b16 %v154
  %v638 = vunpack.c.l.b16 %v155
  %v639 = vunpack.c.l.b16 %v156
  %v640 = vunpack.c.l.b16 %v157
  %v641 = vunpack.c.l.b16 %v158
  %v642 = vunpack.c.l.b16 %v159
  %v643 = vunpack.c.l.b16 %v160
  %v644 = vunpack.c.l.b16 %v161
  %v645 = vunpack.c.l.b16 %v162
  %v646 = vunpack.c.l.b16 %v163
  %v647 = vunpack.c.l.b16 %v164
  %v648 = vunpack.c.l.b16 %v165
  %v649 = vunpack.c.l.b16 %v166
  %v650 = vunpack.c.l.b16 %v167
  %v651 = vunpack.c.l.b16 %v168
  %v652 = vunpack.c.l.b16 %v169
  %v653 = vunpack.c.l.b16 %v170
  %v654 = vunpack.c.l.b16 %v171
  %v655 = vunpack.c.l.b16 %v172
  %v656 = vunpack.c.l.b16 %v173
  %v657 = vunpack.c.l.b16 %v174
  %v658 = vunpack.c.l.b16 %v175
  %v659 = vunpack.c.l.b16 %v176
  %v660 = vunpack.c.l.b16 %v177
  %v661 = vunpack.c.l.b16 %v178
  %v662 = vunpack.c.l.b16 %v179
  %v663 = vunpack.c.l.b16 %v180
  %v664 = vunpack.c.l.b16 %v181
  %v665 = vunpack.c.l.b16 %v182
  %v666 = vunpack.c.l.b16 %v183
  %v667 = vunpack.c.l.b16 %v184
  %v668 = vpack.c.b16 %v571, %v570
  %v669 = vpack.c.b16 %v573, %v572
  %v670 = vpack.c.b16 %v575, %v574
  %v671 = vpack.c.b16 %v577, %v576
  %v672 = vpack.c.b16 %v579, %v578
  %v673 = vpack.c.b16 %v581, %v580
  %v674 = vpack.c.b16 %v583, %v582
  %v675 = vpack.c.b16 %v585, %v584
  %v676 = vpack.c.b16 %v587, %v586
  %v677 = vpack.c.b16 %v589, %v588
  %v678 = vpack.c.b16 %v591, %v590
  %v679 = vpack.c.b16 %v593, %v592
  %v680 = vpack.c.b16 %v595, %v594
  %v681 = vpack.c.b16 %v597, %v596
  %v682 = vpack.c.b16 %v599, %v598
  %v683 = vpack.c.b16 %v601, %v600
  %v684 = vpack.c.b16 %v603, %v602
  %v685 = vpack.c.b16 %v605, %v604
  %v686 = vpack.c.b16 %v607, %v606
  %v687 = vpack.c.b16 %v609, %v608
  %v688 = vpack.c.b16 %v611, %v610
  %v689 = vpack.c.b16 %v613, %v612
  %v690 = vpack.c.b16 %v615, %v614
  %v691 = vpack.c.b16 %v617, %v616
  %v692 = vpack.c.b16 %v619, %v618
  %v693 = vpack.c.b16 %v621, %v620
  %v694 = vpack.c.b16 %v623, %v622
  %v695 = vpack.c.b16 %v625, %v624
  %v696 = vpack.c.b16 %v627, %v626
  %v697 = vpack.c.b16 %v629, %v628
  %v698 = vpack.c.b16 %v631, %v630
  %v699 = vpack.c.b16 %v633, %v632
  %v700 = vpack.c.b16 %v635, %v634
  %v701 = vpack.c.b16 %v637, %v636
  %v702 = vpack.c.b16 %v639, %v638
  %v703 = vpack.c.b16 %v641, %v640
  %v704 = vpack.c.b16 %v643, %v642
  %v705 = vpack.c.b16 %v645, %v644
  %v706 = vpack.c.b16 %v647, %v646
  %v707 = vpack.c.b16 %v649, %v648
  %v708 = vpack.c.b16 %v651, %v650
  %v709 = vpack.c.b16 %v653, %v652
  %v710 = vpack.c.b16 %v655, %v654
  %v711 = vpack.c.b16 %v657, %v656
  %v712 = vpack.c.b16 %v659, %v658
  %v713 = vpack.c.b16 %v661, %v660
  %v714 = vpack.c.b16 %v663, %v662
  %v715 = vpack.c.b16 %v665, %v664
  %v716 = vpack.c.b16 %v667, %v666
  %vm766 = vcmask 130048
  %v768 = vsel %vm766, %v374, 0
  %v771 = vsel %vm766, %v381, 0
  %v774 = vsel %vm766, %v388, 0
  %v777 = vsel %vm766, %v395, 0
  %v780 = vsel %vm766, %v402, 0
  %v783 = vsel %vm766, %v409, 0
  %v786 = vsel %vm766, %v416, 0
  %v789 = vsel %vm766, %v423, 0
  %791 = vmatprep.subr.bf16.mxu0 0
  %792 = vmatpush1.bf16.msra.mxu0 %v675
  %793 = vmatprep.subr.bf16.mxu0 0
  %794 = vmatpush1.bf16.msra.mxu0 %v674
  %795 = vmatprep.subr.bf16.mxu0 0
  %796 = vmatpush1.bf16.msra.mxu0 %v673
  %797 = vmatprep.subr.bf16.mxu0 0
  %798 = vmatpush1.bf16.msra.mxu0 %v672
  %799 = vmatprep.subr.bf16.mxu0 0
  %800 = vmatpush1.bf16.msra.mxu0 %v671
  %801 = vmatprep.subr.bf16.mxu0 0
  %802 = vmatpush1.bf16.msra.mxu0 %v670
  %803 = vmatprep.subr.bf16.mxu0 0
  %804 = vmatpush1.bf16.msra.mxu0 %v669
  %805 = vmatprep.subr.bf16.mxu0 0
  %806 = vmatpush1.bf16.msra.mxu0 %v668
  %807 = vmatprep.subr.bf16.mxu0 0
  %808 = vmatpush2.bf16.msra.mxu0 %v683
  %809 = vmatprep.subr.bf16.mxu0 0
  %810 = vmatpush2.bf16.msra.mxu0 %v682
  %811 = vmatprep.subr.bf16.mxu0 0
  %812 = vmatpush2.bf16.msra.mxu0 %v681
  %813 = vmatprep.subr.bf16.mxu0 0
  %814 = vmatpush2.bf16.msra.mxu0 %v680
  %815 = vmatprep.subr.bf16.mxu0 0
  %816 = vmatpush2.bf16.msra.mxu0 %v679
  %817 = vmatprep.subr.bf16.mxu0 0
  %818 = vmatpush2.bf16.msra.mxu0 %v678
  %819 = vmatprep.subr.bf16.mxu0 0
  %820 = vmatpush2.bf16.msra.mxu0 %v677
  %821 = vmatprep.subr.bf16.mxu0 0
  %822 = vmatpush2.bf16.msra.mxu0 %v676
  %823 = vmatprep.mubr.bf16.mxu0 %v369
  %824 = vmatmul.mubr.bf16.gmra.mxu0 %v368
  %v825 = vpop.f32.mrf.mxu0
  %v826 = vadd.f32 %v190, %v825
  %v827 = vpop.f32.mrf.mxu0
  %v828 = vpop.f32.mrf.mxu0
  %v829 = vadd.f32 %v190, %v828
  %v830 = vpop.f32.mrf.mxu0
  %831 = vmatprep.mubr.bf16.mxu0 %v376
  %832 = vmatmul.mubr.bf16.gmra.mxu0 %v375
  %v833 = vpop.f32.mrf.mxu0
  %v834 = vadd.f32 %v190, %v833
  %v835 = vpop.f32.mrf.mxu0
  %v836 = vpop.f32.mrf.mxu0
  %v837 = vadd.f32 %v190, %v836
  %v838 = vpop.f32.mrf.mxu0
  %839 = vmatprep.mubr.bf16.mxu0 %v383
  %840 = vmatmul.mubr.bf16.gmra.mxu0 %v382
  %v841 = vpop.f32.mrf.mxu0
  %v842 = vadd.f32 %v190, %v841
  %v843 = vpop.f32.mrf.mxu0
  %v844 = vpop.f32.mrf.mxu0
  %v845 = vadd.f32 %v190, %v844
  %v846 = vpop.f32.mrf.mxu0
  %847 = vmatprep.mubr.bf16.mxu0 %v390
  %848 = vmatmul.mubr.bf16.gmra.mxu0 %v389
  %v849 = vpop.f32.mrf.mxu0
  %v850 = vadd.f32 %v190, %v849
  %v851 = vpop.f32.mrf.mxu0
  %v852 = vpop.f32.mrf.mxu0
  %v853 = vadd.f32 %v190, %v852
  %v854 = vpop.f32.mrf.mxu0
  %855 = vmatprep.mubr.bf16.mxu0 %v397
  %856 = vmatmul.mubr.bf16.gmra.mxu0 %v396
  %v857 = vpop.f32.mrf.mxu0
  %v858 = vadd.f32 %v190, %v857
  %v859 = vpop.f32.mrf.mxu0
  %v860 = vpop.f32.mrf.mxu0
  %v861 = vadd.f32 %v190, %v860
  %v862 = vpop.f32.mrf.mxu0
  %863 = vmatprep.mubr.bf16.mxu0 %v404
  %864 = vmatmul.mubr.bf16.gmra.mxu0 %v403
  %v865 = vpop.f32.mrf.mxu0
  %v866 = vadd.f32 %v190, %v865
  %v867 = vpop.f32.mrf.mxu0
  %v868 = vpop.f32.mrf.mxu0
  %v869 = vadd.f32 %v190, %v868
  %v870 = vpop.f32.mrf.mxu0
  %871 = vmatprep.mubr.bf16.mxu0 %v411
  %872 = vmatmul.mubr.bf16.gmra.mxu0 %v410
  %v873 = vpop.f32.mrf.mxu0
  %v874 = vadd.f32 %v190, %v873
  %v875 = vpop.f32.mrf.mxu0
  %v876 = vpop.f32.mrf.mxu0
  %v877 = vadd.f32 %v190, %v876
  %v878 = vpop.f32.mrf.mxu0
  %879 = vmatprep.mubr.bf16.mxu0 %v418
  %880 = vmatmul.mubr.bf16.gmra.mxu0 %v417
  %v881 = vpop.f32.mrf.mxu0
  %v882 = vadd.f32 %v190, %v881
  %v883 = vpop.f32.mrf.mxu0
  %v884 = vpop.f32.mrf.mxu0
  %v885 = vadd.f32 %v190, %v884
  %v886 = vpop.f32.mrf.mxu0
  %887 = vdwg.mxu0
  %888 = vmatprep.subr.bf16.mxu0 0
  %889 = vmatpush1.bf16.msra.mxu0 %v691
  %890 = vmatprep.subr.bf16.mxu0 0
  %891 = vmatpush1.bf16.msra.mxu0 %v690
  %892 = vmatprep.subr.bf16.mxu0 0
  %893 = vmatpush1.bf16.msra.mxu0 %v689
  %894 = vmatprep.subr.bf16.mxu0 0
  %895 = vmatpush1.bf16.msra.mxu0 %v688
  %896 = vmatprep.subr.bf16.mxu0 0
  %897 = vmatpush1.bf16.msra.mxu0 %v687
  %898 = vmatprep.subr.bf16.mxu0 0
  %899 = vmatpush1.bf16.msra.mxu0 %v686
  %900 = vmatprep.subr.bf16.mxu0 0
  %901 = vmatpush1.bf16.msra.mxu0 %v685
  %902 = vmatprep.subr.bf16.mxu0 0
  %903 = vmatpush1.bf16.msra.mxu0 %v684
  %904 = vmatprep.subr.bf16.mxu0 0
  %905 = vmatpush2.bf16.msra.mxu0 %v699
  %906 = vmatprep.subr.bf16.mxu0 0
  %907 = vmatpush2.bf16.msra.mxu0 %v698
  %908 = vmatprep.subr.bf16.mxu0 0
  %909 = vmatpush2.bf16.msra.mxu0 %v697
  %910 = vmatprep.subr.bf16.mxu0 0
  %911 = vmatpush2.bf16.msra.mxu0 %v696
  %912 = vmatprep.subr.bf16.mxu0 0
  %913 = vmatpush2.bf16.msra.mxu0 %v695
  %914 = vmatprep.subr.bf16.mxu0 0
  %915 = vmatpush2.bf16.msra.mxu0 %v694
  %916 = vmatprep.subr.bf16.mxu0 0
  %917 = vmatpush2.bf16.msra.mxu0 %v693
  %918 = vmatprep.subr.bf16.mxu0 0
  %919 = vmatpush2.bf16.msra.mxu0 %v692
  %920 = vmatprep.mubr.bf16.mxu0 %v371
  %921 = vmatmul.mubr.bf16.gmra.mxu0 %v370
  %v922 = vpop.f32.mrf.mxu0
  %v923 = vadd.f32 %v826, %v922
  %v924 = vpop.f32.mrf.mxu0
  %v925 = vpop.f32.mrf.mxu0
  %v926 = vadd.f32 %v829, %v925
  %v927 = vpop.f32.mrf.mxu0
  %928 = vmatprep.mubr.bf16.mxu0 %v378
  %929 = vmatmul.mubr.bf16.gmra.mxu0 %v377
  %v930 = vpop.f32.mrf.mxu0
  %v931 = vadd.f32 %v834, %v930
  %v932 = vpop.f32.mrf.mxu0
  %v933 = vpop.f32.mrf.mxu0
  %v934 = vadd.f32 %v837, %v933
  %v935 = vpop.f32.mrf.mxu0
  %936 = vmatprep.mubr.bf16.mxu0 %v385
  %937 = vmatmul.mubr.bf16.gmra.mxu0 %v384
  %v938 = vpop.f32.mrf.mxu0
  %v939 = vadd.f32 %v842, %v938
  %v940 = vpop.f32.mrf.mxu0
  %v941 = vpop.f32.mrf.mxu0
  %v942 = vadd.f32 %v845, %v941
  %v943 = vpop.f32.mrf.mxu0
  %944 = vmatprep.mubr.bf16.mxu0 %v392
  %945 = vmatmul.mubr.bf16.gmra.mxu0 %v391
  %v946 = vpop.f32.mrf.mxu0
  %v947 = vadd.f32 %v850, %v946
  %v948 = vpop.f32.mrf.mxu0
  %v949 = vpop.f32.mrf.mxu0
  %v950 = vadd.f32 %v853, %v949
  %v951 = vpop.f32.mrf.mxu0
  %952 = vmatprep.mubr.bf16.mxu0 %v399
  %953 = vmatmul.mubr.bf16.gmra.mxu0 %v398
  %v954 = vpop.f32.mrf.mxu0
  %v955 = vadd.f32 %v858, %v954
  %v956 = vpop.f32.mrf.mxu0
  %v957 = vpop.f32.mrf.mxu0
  %v958 = vadd.f32 %v861, %v957
  %v959 = vpop.f32.mrf.mxu0
  %960 = vmatprep.mubr.bf16.mxu0 %v406
  %961 = vmatmul.mubr.bf16.gmra.mxu0 %v405
  %v962 = vpop.f32.mrf.mxu0
  %v963 = vadd.f32 %v866, %v962
  %v964 = vpop.f32.mrf.mxu0
  %v965 = vpop.f32.mrf.mxu0
  %v966 = vadd.f32 %v869, %v965
  %v967 = vpop.f32.mrf.mxu0
  %968 = vmatprep.mubr.bf16.mxu0 %v413
  %969 = vmatmul.mubr.bf16.gmra.mxu0 %v412
  %v970 = vpop.f32.mrf.mxu0
  %v971 = vadd.f32 %v874, %v970
  %v972 = vpop.f32.mrf.mxu0
  %v973 = vpop.f32.mrf.mxu0
  %v974 = vadd.f32 %v877, %v973
  %v975 = vpop.f32.mrf.mxu0
  %976 = vmatprep.mubr.bf16.mxu0 %v420
  %977 = vmatmul.mubr.bf16.gmra.mxu0 %v419
  %v978 = vpop.f32.mrf.mxu0
  %v979 = vadd.f32 %v882, %v978
  %v980 = vpop.f32.mrf.mxu0
  %v981 = vpop.f32.mrf.mxu0
  %v982 = vadd.f32 %v885, %v981
  %v983 = vpop.f32.mrf.mxu0
  %984 = vdwg.mxu0
  %985 = vmatprep.subr.bf16.mxu0 0
  %986 = vmatpush1.bf16.msra.mxu0 %v707
  %987 = vmatprep.subr.bf16.mxu0 0
  %988 = vmatpush1.bf16.msra.mxu0 %v706
  %989 = vmatprep.subr.bf16.mxu0 0
  %990 = vmatpush1.bf16.msra.mxu0 %v705
  %991 = vmatprep.subr.bf16.mxu0 0
  %992 = vmatpush1.bf16.msra.mxu0 %v704
  %993 = vmatprep.subr.bf16.mxu0 0
  %994 = vmatpush1.bf16.msra.mxu0 %v703
  %995 = vmatprep.subr.bf16.mxu0 0
  %996 = vmatpush1.bf16.msra.mxu0 %v702
  %997 = vmatprep.subr.bf16.mxu0 0
  %998 = vmatpush1.bf16.msra.mxu0 %v701
  %999 = vmatprep.subr.bf16.mxu0 0
  %1000 = vmatpush1.bf16.msra.mxu0 %v700
  %1001 = vmatprep.subr.bf16.mxu0 0
  %1002 = vmatpush2.bf16.msra.mxu0 %v715
  %1003 = vmatprep.subr.bf16.mxu0 0
  %1004 = vmatpush2.bf16.msra.mxu0 %v714
  %1005 = vmatprep.subr.bf16.mxu0 0
  %1006 = vmatpush2.bf16.msra.mxu0 %v713
  %1007 = vmatprep.subr.bf16.mxu0 0
  %1008 = vmatpush2.bf16.msra.mxu0 %v712
  %1009 = vmatprep.subr.bf16.mxu0 0
  %1010 = vmatpush2.bf16.msra.mxu0 %v711
  %1011 = vmatprep.subr.bf16.mxu0 0
  %1012 = vmatpush2.bf16.msra.mxu0 %v710
  %1013 = vmatprep.subr.bf16.mxu0 0
  %1014 = vmatpush2.bf16.msra.mxu0 %v709
  %1015 = vmatprep.subr.bf16.mxu0 0
  %1016 = vmatpush2.bf16.msra.mxu0 %v708
  %1017 = vmatprep.mubr.bf16.mxu0 %v373
  %1018 = vmatmul.mubr.bf16.gmra.mxu0 %v372
  %v1019 = vpop.f32.mrf.mxu0
  %v1020 = vadd.f32 %v923, %v1019
  %v1021 = vpop.f32.mrf.mxu0
  %v1022 = vpop.f32.mrf.mxu0
  %v1023 = vadd.f32 %v926, %v1022
  %v1024 = vpop.f32.mrf.mxu0
  %1025 = vmatprep.mubr.bf16.mxu0 %v380
  %1026 = vmatmul.mubr.bf16.gmra.mxu0 %v379
  %v1027 = vpop.f32.mrf.mxu0
  %v1028 = vadd.f32 %v931, %v1027
  %v1029 = vpop.f32.mrf.mxu0
  %v1030 = vpop.f32.mrf.mxu0
  %v1031 = vadd.f32 %v934, %v1030
  %v1032 = vpop.f32.mrf.mxu0
  %1033 = vmatprep.mubr.bf16.mxu0 %v387
  %1034 = vmatmul.mubr.bf16.gmra.mxu0 %v386
  %v1035 = vpop.f32.mrf.mxu0
  %v1036 = vadd.f32 %v939, %v1035
  %v1037 = vpop.f32.mrf.mxu0
  %v1038 = vpop.f32.mrf.mxu0
  %v1039 = vadd.f32 %v942, %v1038
  %v1040 = vpop.f32.mrf.mxu0
  %1041 = vmatprep.mubr.bf16.mxu0 %v394
  %1042 = vmatmul.mubr.bf16.gmra.mxu0 %v393
  %v1043 = vpop.f32.mrf.mxu0
  %v1044 = vadd.f32 %v947, %v1043
  %v1045 = vpop.f32.mrf.mxu0
  %v1046 = vpop.f32.mrf.mxu0
  %v1047 = vadd.f32 %v950, %v1046
  %v1048 = vpop.f32.mrf.mxu0
  %1049 = vmatprep.mubr.bf16.mxu0 %v401
  %1050 = vmatmul.mubr.bf16.gmra.mxu0 %v400
  %v1051 = vpop.f32.mrf.mxu0
  %v1052 = vadd.f32 %v955, %v1051
  %v1053 = vpop.f32.mrf.mxu0
  %v1054 = vpop.f32.mrf.mxu0
  %v1055 = vadd.f32 %v958, %v1054
  %v1056 = vpop.f32.mrf.mxu0
  %1057 = vmatprep.mubr.bf16.mxu0 %v408
  %1058 = vmatmul.mubr.bf16.gmra.mxu0 %v407
  %v1059 = vpop.f32.mrf.mxu0
  %v1060 = vadd.f32 %v963, %v1059
  %v1061 = vpop.f32.mrf.mxu0
  %v1062 = vpop.f32.mrf.mxu0
  %v1063 = vadd.f32 %v966, %v1062
  %v1064 = vpop.f32.mrf.mxu0
  %1065 = vmatprep.mubr.bf16.mxu0 %v415
  %1066 = vmatmul.mubr.bf16.gmra.mxu0 %v414
  %v1067 = vpop.f32.mrf.mxu0
  %v1068 = vadd.f32 %v971, %v1067
  %v1069 = vpop.f32.mrf.mxu0
  %v1070 = vpop.f32.mrf.mxu0
  %v1071 = vadd.f32 %v974, %v1070
  %v1072 = vpop.f32.mrf.mxu0
  %1073 = vmatprep.mubr.bf16.mxu0 %v422
  %1074 = vmatmul.mubr.bf16.gmra.mxu0 %v421
  %v1075 = vpop.f32.mrf.mxu0
  %v1076 = vadd.f32 %v979, %v1075
  %v1077 = vpop.f32.mrf.mxu0
  %v1078 = vpop.f32.mrf.mxu0
  %v1079 = vadd.f32 %v982, %v1078
  %v1080 = vpop.f32.mrf.mxu0
  %1081 = vdwg.mxu0
  %1082 = vmatprep.subr.bf16.mxu0 0
  %1083 = vmatpush1.bf16.msra.mxu0 0
  %1084 = vmatprep.subr.bf16.mxu0 0
  %1085 = vmatpush1.bf16.msra.mxu0 0
  %1086 = vmatprep.subr.bf16.mxu0 0
  %1087 = vmatpush1.bf16.msra.mxu0 0
  %1088 = vmatprep.subr.bf16.mxu0 0
  %1089 = vmatpush1.bf16.msra.mxu0 0
  %1090 = vmatprep.subr.bf16.mxu0 0
  %1091 = vmatpush1.bf16.msra.mxu0 0
  %1092 = vmatprep.subr.bf16.mxu0 0
  %1093 = vmatpush1.bf16.msra.mxu0 0
  %1094 = vmatprep.subr.bf16.mxu0 0
  %1095 = vmatpush1.bf16.msra.mxu0 0
  %1096 = vmatprep.subr.bf16.mxu0 0
  %1097 = vmatpush1.bf16.msra.mxu0 %v716
  %1098 = vmatprep.subr.bf16.mxu0 0
  %1099 = vmatpush2.bf16.msra.mxu0 0
  %1100 = vmatprep.subr.bf16.mxu0 0
  %1101 = vmatpush2.bf16.msra.mxu0 0
  %1102 = vmatprep.subr.bf16.mxu0 0
  %1103 = vmatpush2.bf16.msra.mxu0 0
  %1104 = vmatprep.subr.bf16.mxu0 0
  %1105 = vmatpush2.bf16.msra.mxu0 0
  %1106 = vmatprep.subr.bf16.mxu0 0
  %1107 = vmatpush2.bf16.msra.mxu0 0
  %1108 = vmatprep.subr.bf16.mxu0 0
  %1109 = vmatpush2.bf16.msra.mxu0 0
  %1110 = vmatprep.subr.bf16.mxu0 0
  %1111 = vmatpush2.bf16.msra.mxu0 0
  %1112 = vmatprep.subr.bf16.mxu0 0
  %1113 = vmatpush2.bf16.msra.mxu0 0
  %1114 = vmatprep.mubr.bf16.mxu0 0
  %1115 = vmatmul.mubr.bf16.gmra.mxu0 %v768
  %v1116 = vpop.f32.mrf.mxu0
  %v1117 = vadd.f32 %v1020, %v1116
  %v1118 = vpop.f32.mrf.mxu0
  %v1119 = vpop.f32.mrf.mxu0
  %v1120 = vadd.f32 %v1023, %v1119
  %v1121 = vpop.f32.mrf.mxu0
  %1122 = vmatprep.mubr.bf16.mxu0 0
  %1123 = vmatmul.mubr.bf16.gmra.mxu0 %v771
  %v1124 = vpop.f32.mrf.mxu0
  %v1125 = vadd.f32 %v1028, %v1124
  %v1126 = vpop.f32.mrf.mxu0
  %v1127 = vpop.f32.mrf.mxu0
  %v1128 = vadd.f32 %v1031, %v1127
  %v1129 = vpop.f32.mrf.mxu0
  %1130 = vmatprep.mubr.bf16.mxu0 0
  %1131 = vmatmul.mubr.bf16.gmra.mxu0 %v774
  %v1132 = vpop.f32.mrf.mxu0
  %v1133 = vadd.f32 %v1036, %v1132
  %v1134 = vpop.f32.mrf.mxu0
  %v1135 = vpop.f32.mrf.mxu0
  %v1136 = vadd.f32 %v1039, %v1135
  %v1137 = vpop.f32.mrf.mxu0
  %1138 = vmatprep.mubr.bf16.mxu0 0
  %1139 = vmatmul.mubr.bf16.gmra.mxu0 %v777
  %v1140 = vpop.f32.mrf.mxu0
  %v1141 = vadd.f32 %v1044, %v1140
  %v1142 = vpop.f32.mrf.mxu0
  %v1143 = vpop.f32.mrf.mxu0
  %v1144 = vadd.f32 %v1047, %v1143
  %v1145 = vpop.f32.mrf.mxu0
  %1146 = vmatprep.mubr.bf16.mxu0 0
  %1147 = vmatmul.mubr.bf16.gmra.mxu0 %v780
  %v1148 = vpop.f32.mrf.mxu0
  %v1149 = vadd.f32 %v1052, %v1148
  %v1150 = vpop.f32.mrf.mxu0
  %v1151 = vpop.f32.mrf.mxu0
  %v1152 = vadd.f32 %v1055, %v1151
  %v1153 = vpop.f32.mrf.mxu0
  %1154 = vmatprep.mubr.bf16.mxu0 0
  %1155 = vmatmul.mubr.bf16.gmra.mxu0 %v783
  %v1156 = vpop.f32.mrf.mxu0
  %v1157 = vadd.f32 %v1060, %v1156
  %v1158 = vpop.f32.mrf.mxu0
  %v1159 = vpop.f32.mrf.mxu0
  %v1160 = vadd.f32 %v1063, %v1159
  %v1161 = vpop.f32.mrf.mxu0
  %1162 = vmatprep.mubr.bf16.mxu0 0
  %1163 = vmatmul.mubr.bf16.gmra.mxu0 %v786
  %v1164 = vpop.f32.mrf.mxu0
  %v1165 = vadd.f32 %v1068, %v1164
  %v1166 = vpop.f32.mrf.mxu0
  %v1167 = vpop.f32.mrf.mxu0
  %v1168 = vadd.f32 %v1071, %v1167
  %v1169 = vpop.f32.mrf.mxu0
  %1170 = vmatprep.mubr.bf16.mxu0 0
  %1171 = vmatmul.mubr.bf16.gmra.mxu0 %v789
  %v1172 = vpop.f32.mrf.mxu0
  %v1173 = vadd.f32 %v1076, %v1172
  %v1174 = vpop.f32.mrf.mxu0
  %v1175 = vpop.f32.mrf.mxu0
  %v1176 = vadd.f32 %v1079, %v1175
  %v1177 = vpop.f32.mrf.mxu0
  %1178 = vdwg.mxu0
  %vm1179 = vcmp.ge.f32.partialorder %v1117, 0.0
  %vm1180 = vcmp.ge.f32.partialorder %v1120, 0.0
  %vm1181 = vcmp.ge.f32.partialorder %v1125, 0.0
  %vm1182 = vcmp.ge.f32.partialorder %v1128, 0.0
  %vm1183 = vcmp.ge.f32.partialorder %v1133, 0.0
  %vm1184 = vcmp.ge.f32.partialorder %v1136, 0.0
  %vm1185 = vcmp.ge.f32.partialorder %v1141, 0.0
  %vm1186 = vcmp.ge.f32.partialorder %v1144, 0.0
  %vm1187 = vcmp.ge.f32.partialorder %v1149, 0.0
  %vm1188 = vcmp.ge.f32.partialorder %v1152, 0.0
  %vm1189 = vcmp.ge.f32.partialorder %v1157, 0.0
  %vm1190 = vcmp.ge.f32.partialorder %v1160, 0.0
  %vm1191 = vcmp.ge.f32.partialorder %v1165, 0.0
  %vm1192 = vcmp.ge.f32.partialorder %v1168, 0.0
  %vm1193 = vcmp.ge.f32.partialorder %v1173, 0.0
  %vm1194 = vcmp.ge.f32.partialorder %v1176, 0.0
  %v1195 = vmul.f32 %v1117, 0.1
  %v1196 = vmul.f32 %v1120, 0.1
  %v1197 = vmul.f32 %v1125, 0.1
  %v1198 = vmul.f32 %v1128, 0.1
  %v1199 = vmul.f32 %v1133, 0.1
  %v1200 = vmul.f32 %v1136, 0.1
  %v1201 = vmul.f32 %v1141, 0.1
  %v1202 = vmul.f32 %v1144, 0.1
  %v1203 = vmul.f32 %v1149, 0.1
  %v1204 = vmul.f32 %v1152, 0.1
  %v1205 = vmul.f32 %v1157, 0.1
  %v1206 = vmul.f32 %v1160, 0.1
  %v1207 = vmul.f32 %v1165, 0.1
  %v1208 = vmul.f32 %v1168, 0.1
  %v1209 = vmul.f32 %v1173, 0.1
  %v1210 = vmul.f32 %v1176, 0.1
  %v1211 = vsel %vm1179, %v1117, %v1195
  %v1212 = vsel %vm1180, %v1120, %v1196
  %v1213 = vsel %vm1181, %v1125, %v1197
  %v1214 = vsel %vm1182, %v1128, %v1198
  %v1215 = vsel %vm1183, %v1133, %v1199
  %v1216 = vsel %vm1184, %v1136, %v1200
  %v1217 = vsel %vm1185, %v1141, %v1201
  %v1218 = vsel %vm1186, %v1144, %v1202
  %v1219 = vsel %vm1187, %v1149, %v1203
  %v1220 = vsel %vm1188, %v1152, %v1204
  %v1221 = vsel %vm1189, %v1157, %v1205
  %v1222 = vsel %vm1190, %v1160, %v1206
  %v1223 = vsel %vm1191, %v1165, %v1207
  %v1224 = vsel %vm1192, %v1168, %v1208
  %v1225 = vsel %vm1193, %v1173, %v1209
  %v1226 = vsel %vm1194, %v1176, %v1210
  %v1227 = vld [vmem:[%s3] sm:$0x1]
  %v1228 = vunpack.c.l.bf16 %v1227
  %v1229 = vlaneseq
  %v1230 = vshrl.u32 %v1229, 7
  %v1231 = vsub.s32 0, %v1230
  %v1232 = vrot.slane %v1228, %v1231
  %v1233 = vmul.f32 %v1211, %v1232
  %v1234 = vmul.f32 %v1212, %v1232
  %v1235 = vmul.f32 %v1213, %v1232
  %v1236 = vmul.f32 %v1214, %v1232
  %v1237 = vmul.f32 %v1215, %v1232
  %v1238 = vmul.f32 %v1216, %v1232
  %v1239 = vmul.f32 %v1217, %v1232
  %v1240 = vmul.f32 %v1218, %v1232
  %v1241 = vmul.f32 %v1219, %v1232
  %v1242 = vmul.f32 %v1220, %v1232
  %v1243 = vmul.f32 %v1221, %v1232
  %v1244 = vmul.f32 %v1222, %v1232
  %v1245 = vmul.f32 %v1223, %v1232
  %v1246 = vmul.f32 %v1224, %v1232
  %v1247 = vmul.f32 %v1225, %v1232
  %v1248 = vmul.f32 %v1226, %v1232
  %1249 = vadd.xlane.f32.xlu0 %v1233
  %v1250 = vpop.xlane.xlu0 %1249
  %1251 = vadd.xlane.f32.xlu0 %v1234
  %v1252 = vpop.xlane.xlu0 %1251
  %1253 = vadd.xlane.f32.xlu0 %v1235
  %v1254 = vpop.xlane.xlu0 %1253
  %1255 = vadd.xlane.f32.xlu0 %v1236
  %v1256 = vpop.xlane.xlu0 %1255
  %1257 = vadd.xlane.f32.xlu0 %v1237
  %v1258 = vpop.xlane.xlu0 %1257
  %1259 = vadd.xlane.f32.xlu0 %v1238
  %v1260 = vpop.xlane.xlu0 %1259
  %1261 = vadd.xlane.f32.xlu0 %v1239
  %v1262 = vpop.xlane.xlu0 %1261
  %1263 = vadd.xlane.f32.xlu0 %v1240
  %v1264 = vpop.xlane.xlu0 %1263
  %1265 = vadd.xlane.f32.xlu0 %v1241
  %v1266 = vpop.xlane.xlu0 %1265
  %1267 = vadd.xlane.f32.xlu0 %v1242
  %v1268 = vpop.xlane.xlu0 %1267
  %1269 = vadd.xlane.f32.xlu0 %v1243
  %v1270 = vpop.xlane.xlu0 %1269
  %1271 = vadd.xlane.f32.xlu0 %v1244
  %v1272 = vpop.xlane.xlu0 %1271
  %1273 = vadd.xlane.f32.xlu0 %v1245
  %v1274 = vpop.xlane.xlu0 %1273
  %1275 = vadd.xlane.f32.xlu0 %v1246
  %v1276 = vpop.xlane.xlu0 %1275
  %1277 = vadd.xlane.f32.xlu0 %v1247
  %v1278 = vpop.xlane.xlu0 %1277
  %1279 = vadd.xlane.f32.xlu0 %v1248
  %v1280 = vpop.xlane.xlu0 %1279
  %v1281 = vld [vmem:[#allocation2] sm:$0x1]
  %v1283 = vlaneseq
  %v1284 = vshrl.u32 %v1283, 7
  %v1285 = vsub.s32 0, %v1284
  %v1286 = vrot.slane %v1281, %v1285
  %v1288 = vadd.f32 %v1250, %v1286
  %v1289 = vadd.f32 %v1252, %v1286
  %v1290 = vadd.f32 %v1254, %v1286
  %v1291 = vadd.f32 %v1256, %v1286
  %v1292 = vadd.f32 %v1258, %v1286
  %v1293 = vadd.f32 %v1260, %v1286
  %v1294 = vadd.f32 %v1262, %v1286
  %v1295 = vadd.f32 %v1264, %v1286
  %v1296 = vadd.f32 %v1266, %v1286
  %v1297 = vadd.f32 %v1268, %v1286
  %v1298 = vadd.f32 %v1270, %v1286
  %v1299 = vadd.f32 %v1272, %v1286
  %v1300 = vadd.f32 %v1274, %v1286
  %v1301 = vadd.f32 %v1276, %v1286
  %v1302 = vadd.f32 %v1278, %v1286
  %v1303 = vadd.f32 %v1280, %v1286
  %v1304 = vsub.f32 0.0, %v1288
  %v1305 = vsub.f32 0.0, %v1289
  %v1306 = vsub.f32 0.0, %v1290
  %v1307 = vsub.f32 0.0, %v1291
  %v1308 = vsub.f32 0.0, %v1292
  %v1309 = vsub.f32 0.0, %v1293
  %v1310 = vsub.f32 0.0, %v1294
  %v1311 = vsub.f32 0.0, %v1295
  %v1312 = vsub.f32 0.0, %v1296
  %v1313 = vsub.f32 0.0, %v1297
  %v1314 = vsub.f32 0.0, %v1298
  %v1315 = vsub.f32 0.0, %v1299
  %v1316 = vsub.f32 0.0, %v1300
  %v1317 = vsub.f32 0.0, %v1301
  %v1318 = vsub.f32 0.0, %v1302
  %v1319 = vsub.f32 0.0, %v1303
  %v1320 = vmul.f32 %v1304, 1.442695
  %v1321 = vpow.pop %v1320
  %v1322 = vmul.f32 %v1305, 1.442695
  %v1323 = vpow.pop %v1322
  %v1324 = vmul.f32 %v1306, 1.442695
  %v1325 = vpow.pop %v1324
  %v1326 = vmul.f32 %v1307, 1.442695
  %v1327 = vpow.pop %v1326
  %v1328 = vmul.f32 %v1308, 1.442695
  %v1329 = vpow.pop %v1328
  %v1330 = vmul.f32 %v1309, 1.442695
  %v1331 = vpow.pop %v1330
  %v1332 = vmul.f32 %v1310, 1.442695
  %v1333 = vpow.pop %v1332
  %v1334 = vmul.f32 %v1311, 1.442695
  %v1335 = vpow.pop %v1334
  %v1336 = vmul.f32 %v1312, 1.442695
  %v1337 = vpow.pop %v1336
  %v1338 = vmul.f32 %v1313, 1.442695
  %v1339 = vpow.pop %v1338
  %v1340 = vmul.f32 %v1314, 1.442695
  %v1341 = vpow.pop %v1340
  %v1342 = vmul.f32 %v1315, 1.442695
  %v1343 = vpow.pop %v1342
  %v1344 = vmul.f32 %v1316, 1.442695
  %v1345 = vpow.pop %v1344
  %v1346 = vmul.f32 %v1317, 1.442695
  %v1347 = vpow.pop %v1346
  %v1348 = vmul.f32 %v1318, 1.442695
  %v1349 = vpow.pop %v1348
  %v1350 = vmul.f32 %v1319, 1.442695
  %v1351 = vpow.pop %v1350
  %v1352 = vadd.f32 %v1321, 1.0
  %v1353 = vadd.f32 %v1323, 1.0
  %v1354 = vadd.f32 %v1325, 1.0
  %v1355 = vadd.f32 %v1327, 1.0
  %v1356 = vadd.f32 %v1329, 1.0
  %v1357 = vadd.f32 %v1331, 1.0
  %v1358 = vadd.f32 %v1333, 1.0
  %v1359 = vadd.f32 %v1335, 1.0
  %v1360 = vadd.f32 %v1337, 1.0
  %v1361 = vadd.f32 %v1339, 1.0
  %v1362 = vadd.f32 %v1341, 1.0
  %v1363 = vadd.f32 %v1343, 1.0
  %v1364 = vadd.f32 %v1345, 1.0
  %v1365 = vadd.f32 %v1347, 1.0
  %v1366 = vadd.f32 %v1349, 1.0
  %v1367 = vadd.f32 %v1351, 1.0
  %v1368 = vrcp.pop %v1352
  %v1369 = vrcp.pop %v1353
  %v1370 = vrcp.pop %v1354
  %v1371 = vrcp.pop %v1355
  %v1372 = vrcp.pop %v1356
  %v1373 = vrcp.pop %v1357
  %v1374 = vrcp.pop %v1358
  %v1375 = vrcp.pop %v1359
  %v1376 = vrcp.pop %v1360
  %v1377 = vrcp.pop %v1361
  %v1378 = vrcp.pop %v1362
  %v1379 = vrcp.pop %v1363
  %v1380 = vrcp.pop %v1364
  %v1381 = vrcp.pop %v1365
  %v1382 = vrcp.pop %v1366
  %v1383 = vrcp.pop %v1367
  %vm1384 = vcmask 7168
  %1385 = vst.msk [vmem:[%s5] sm:$0xff] %vm1384, %v1368
  %1386 = vst.msk [vmem:[%s5 + $0x8] sm:$0xff] %vm1384, %v1369
  %1387 = vst.msk [vmem:[%s5 + $0x10] sm:$0xff] %vm1384, %v1370
  %1388 = vst.msk [vmem:[%s5 + $0x18] sm:$0xff] %vm1384, %v1371
  %1389 = vst.msk [vmem:[%s5 + $0x20] sm:$0xff] %vm1384, %v1372
  %1390 = vst.msk [vmem:[%s5 + $0x28] sm:$0xff] %vm1384, %v1373
  %1391 = vst.msk [vmem:[%s5 + $0x30] sm:$0xff] %vm1384, %v1374
  %1392 = vst.msk [vmem:[%s5 + $0x38] sm:$0xff] %vm1384, %v1375
  %1393 = vst.msk [vmem:[%s5 + $0x40] sm:$0xff] %vm1384, %v1376
  %1394 = vst.msk [vmem:[%s5 + $0x48] sm:$0xff] %vm1384, %v1377
  %1395 = vst.msk [vmem:[%s5 + $0x50] sm:$0xff] %vm1384, %v1378
  %1396 = vst.msk [vmem:[%s5 + $0x58] sm:$0xff] %vm1384, %v1379
  %1397 = vst.msk [vmem:[%s5 + $0x60] sm:$0xff] %vm1384, %v1380
  %1398 = vst.msk [vmem:[%s5 + $0x68] sm:$0xff] %vm1384, %v1381
  %1399 = vst.msk [vmem:[%s5 + $0x70] sm:$0xff] %vm1384, %v1382
  %1400 = vst.msk [vmem:[%s5 + $0x78] sm:$0xff] %vm1384, %v1383
  // Predicated region
  $region22: #{discriminator_forward.1} parent=0 // pred_check
    _
  $region23: #{discriminator_forward.1} parent=0 // pred_check_branch
    %1402 = sbr.rel (0) target = $region25
  $region24: #{discriminator_forward.1} parent=0 // pred_region
    _
  $region25: #{discriminator_forward.1} parent=0 // pred_fallthru
    _
  // Predicated region
  $region26: #{discriminator_forward.1} parent=0 // pred_check
    _
  $region27: #{discriminator_forward.1} parent=0 // pred_check_branch
    %1404 = sbr.rel (0) target = $region29
  $region28: #{discriminator_forward.1} parent=0 // pred_region
    _
  $region29: #{discriminator_forward.1} parent=0 // pred_fallthru
    _

</llo_original>
